<compile_context>
chip_gen: v5e
topology: v5e:2x2
jax: 0.10.0
libtpu: 0.0.40
codegen_flags: <defaults>
</compile_context>

<pallas_src>
import functools
import math

import jax
import jax.numpy as jnp
from jax.experimental import pallas as pl
from jax.experimental.pallas import tpu as pltpu


_SUBLANE = 8
_LANES = 1024                     # 8 * 128 lane-dense slab width
_SMALL_INPUT_BYTES = 2 << 20      # <= 2 MiB total input -> single-block fast path


def _stable_bce_with_logits(x, t):
    # max(x,0) - x*t + log1p(exp(-|x|)) — same numerically stable form torch uses.
    return jnp.maximum(x, 0.0) - x * t + jnp.log1p(jnp.exp(-jnp.abs(x)))


def _vmem_budgets():
    """Generation-aware (vmem_limit_bytes, live-input-tile byte budget)."""
    cap = 64 << 20  # conservative default = v7x per-TC VMEM
    try:
        info = pltpu.get_tpu_info()
        cap = int(getattr(info, "vmem_capacity_bytes", cap)) or cap
    except Exception:
        pass
    vmem_limit = min(cap * 3 // 4, 100 << 20)   # ~48 MiB (v7x) / ~96 MiB (v5e/v6e)
    tile_budget = cap * 2 // 5                  # ~25 MiB (v7x) / ~51 MiB (v5e/v6e)
    return vmem_limit, tile_budget


# ---------------------------------------------------------------------------
# Fast path: whole (small) problem in one block, single grid step.
# ---------------------------------------------------------------------------
def _wbce_single_block_kernel(x_ref, t_ref, w_ref, out_ref):
    x = x_ref[...].astype(jnp.float32)
    t = t_ref[...].astype(jnp.float32)
    w = w_ref[...].astype(jnp.float32)
    bce = _stable_bce_with_logits(x, t)
    out_ref[...] = (jnp.sum(bce * w) / jnp.sum(w)).reshape(1, 1)


# ---------------------------------------------------------------------------
# Tiled path: grid = (shards, steps); shards is a "parallel" axis, steps is the
# "arbitrary" streaming/reduction axis.  Each shard keeps two tiny (1, 1024)
# f32 accumulators in VMEM, updated with a per-step sublane reduce (hidden
# under DMA); the single cross-lane reduce happens once in the epilogue.
# ---------------------------------------------------------------------------
def _wbce_tiled_kernel(x_ref, t_ref, w_ref, num_ref, den_ref,
                       num_acc, den_acc, *, steps, tile_rows, rows, needs_mask):
    j = pl.program_id(1)

    @pl.when(j == 0)
    def _():
        num_acc[...] = jnp.zeros_like(num_acc)
        den_acc[...] = jnp.zeros_like(den_acc)

    x = x_ref[...].astype(jnp.float32)
    t = t_ref[...].astype(jnp.float32)
    w = w_ref[...].astype(jnp.float32)

    if needs_mask:
        # Ragged last tile: rows beyond `rows` hold undefined pad data — zero
        # them (weight 0 => exact; x,t zeroed so no NaN/Inf can leak through).
        start = (pl.program_id(0) * steps + j) * tile_rows
        row_ids = jax.lax.broadcasted_iota(jnp.int32, x.shape, 0) + start
        keep = row_ids < rows
        x = jnp.where(keep, x, 0.0)
        t = jnp.where(keep, t, 0.0)
        w = jnp.where(keep, w, 0.0)

    bce = _stable_bce_with_logits(x, t)

    # Cheap sublane reduce per step; all VPU/EUP/XLU work here is hidden under
    # the HBM DMA on this bandwidth-bound kernel.
    num_acc[...] += jnp.sum(bce * w, axis=0, keepdims=True)
    den_acc[...] += jnp.sum(w, axis=0, keepdims=True)

    @pl.when(j == pl.num_programs(1) - 1)
    def _():
        num_ref[...] = jnp.sum(num_acc[...]).reshape(1, 1, 1)
        den_ref[...] = jnp.sum(den_acc[...]).reshape(1, 1, 1)


def _to_slab(a, pad):
    """Flatten to 1D, zero-pad, reshape to a lane-dense (rows, 1024) slab."""
    flat = a.reshape(-1)
    if pad:
        flat = jnp.concatenate([flat, jnp.zeros((pad,), flat.dtype)])
    return flat.reshape(-1, _LANES)


def weighted_bce_loss(output, target, weights, *,
                      tile_budget_bytes=None, force_tiled=False):
    """Pallas implementation of WeigthedBCELoss.forward. Returns a scalar f32."""
    assert output.shape == target.shape == weights.shape
    total = int(math.prod(output.shape))
    itembytes = (output.dtype.itemsize + target.dtype.itemsize
                 + weights.dtype.itemsize)
    in_bytes = total * itembytes

    vmem_limit, default_budget = _vmem_budgets()
    tile_budget = int(tile_budget_bytes) if tile_budget_bytes else default_budget

    # ---- Small-input fast path: one block, no phase logic. ----
    if not force_tiled and in_bytes <= _SMALL_INPUT_BYTES:
        if output.ndim == 2:
            o2, t2, w2 = output, target, weights
        else:
            o2 = output.reshape(1, total)
            t2 = target.reshape(1, total)
            w2 = weights.reshape(1, total)
        M, N = o2.shape
        out = pl.pallas_call(
            _wbce_single_block_kernel,
            out_shape=jax.ShapeDtypeStruct((1, 1), jnp.float32),
            grid_spec=pltpu.PrefetchScalarGridSpec(
                num_scalar_prefetch=0,
                grid=(1,),
                in_specs=[pl.BlockSpec((M, N), lambda i: (0, 0))] * 3,
                out_specs=pl.BlockSpec((1, 1), lambda i: (0, 0)),
            ),
            compiler_params=pltpu.CompilerParams(
                dimension_semantics=("arbitrary",),
                vmem_limit_bytes=vmem_limit,
            ),
        )(o2, t2, w2)
        return out[0, 0]

    # ---- Tiled streaming path. ----
    # Lane-dense slab; zero-weight element padding is exact.
    pad = (-total) % _LANES
    # TODO(synk): when total % 1024 != 0 the concat-pad materialises one copy
    # of the inputs; callers with hot odd shapes should pad upstream.
    x2 = _to_slab(output, pad)
    t2 = _to_slab(target, pad)
    w2 = _to_slab(weights, pad)
    rows = x2.shape[0]

    # Dtype-aware tile sizing: double-buffered input bytes per slab row.
    # (Accumulators are only 2 * 4 KiB now, so the whole budget goes to tiles.)
    bytes_per_row = _LANES * 2 * itembytes
    cap_rows = max(_SUBLANE,
                   (tile_budget // bytes_per_row) // _SUBLANE * _SUBLANE)
    rows_up = ((rows + _SUBLANE - 1) // _SUBLANE) * _SUBLANE
    tile_rows = min(cap_rows, rows_up)
    tiles = -(-rows // tile_rows)

    # Split across (up to) two TensorCores when the tile count allows it; on
    # single-TC parts the leading "parallel" axis simply runs serially.
    shards = 2 if (tiles >= 2 and tiles % 2 == 0) else 1
    steps = tiles // shards
    needs_mask = (tiles * tile_rows != rows)

    kernel = functools.partial(_wbce_tiled_kernel, steps=steps,
                               tile_rows=tile_rows, rows=rows,
                               needs_mask=needs_mask)

    row_spec = pl.BlockSpec((tile_rows, _LANES), lambda c, j: (c * steps + j, 0))
    part_spec = pl.BlockSpec((1, 1, 1), lambda c, j: (c, 0, 0))

    num_part, den_part = pl.pallas_call(
        kernel,
        out_shape=(jax.ShapeDtypeStruct((shards, 1, 1), jnp.float32),
                   jax.ShapeDtypeStruct((shards, 1, 1), jnp.float32)),
        grid_spec=pltpu.PrefetchScalarGridSpec(
            num_scalar_prefetch=0,
            grid=(shards, steps),
            in_specs=[row_spec, row_spec, row_spec],
            out_specs=(part_spec, part_spec),
            scratch_shapes=[
                pltpu.VMEM((1, _LANES), jnp.float32),   # weighted-loss partials
                pltpu.VMEM((1, _LANES), jnp.float32),   # weight partials
            ],
        ),
        compiler_params=pltpu.CompilerParams(
            dimension_semantics=("parallel", "arbitrary"),
            vmem_limit_bytes=vmem_limit,
        ),
    )(x2, t2, w2)

    # Combine per-shard partial sums (4 tiny scalars) in plain JAX.
    return jnp.sum(num_part) / jnp.sum(den_part)


def _reference(output, target, weights):
    output = output.astype(jnp.float32)
    target = target.astype(jnp.float32)
    weights = weights.astype(jnp.float32)
    bce = _stable_bce_with_logits(output, target)
    return jnp.sum(bce * weights) / jnp.sum(weights)


if __name__ == "__main__":
    # 1) Small module-consistent shape — exercises the single-block fast path.
    key = jax.random.PRNGKey(0)
    k1, k2, k3 = jax.random.split(key, 3)
    batch, num_labels = 16, 256
    output = jax.random.normal(k1, (batch, num_labels), dtype=jnp.float32)
    target = (jax.random.uniform(k2, (batch, num_labels)) > 0.5).astype(jnp.float32)
    weights = jax.random.uniform(k3, (batch, num_labels), dtype=jnp.float32) + 0.1

    loss = weighted_bce_loss(output, target, weights)
    jax.block_until_ready(loss)
    ref = _reference(output, target, weights)
    assert jnp.allclose(loss, ref, rtol=1e-5, atol=1e-5), (loss, ref)

    # 2) Ragged bf16 shape through the tiled path (small budget forces several
    #    8-row tiles, 2 shards, element padding and last-tile row masking).
    k4, k5, k6 = jax.random.split(jax.random.PRNGKey(1), 3)
    M2, N2 = 160, 300
    out2 = jax.random.normal(k4, (M2, N2), dtype=jnp.float32).astype(jnp.bfloat16)
    tgt2 = (jax.random.uniform(k5, (M2, N2)) > 0.5).astype(jnp.bfloat16)
    w2 = (jax.random.uniform(k6, (M2, N2), dtype=jnp.float32) + 0.1).astype(jnp.bfloat16)

    loss2 = weighted_bce_loss(out2, tgt2, w2,
                              tile_budget_bytes=256 * 1024, force_tiled=True)
    jax.block_until_ready(loss2)
    ref2 = _reference(out2, tgt2, w2)
    assert jnp.allclose(loss2, ref2, rtol=1e-4, atol=1e-4), (loss2, ref2)

    # 3) Divisible f32 shape large enough to take the tiled path by default.
    k7, k8, k9 = jax.random.split(jax.random.PRNGKey(2), 3)
    M3, N3 = 512, 1024
    out3 = jax.random.normal(k7, (M3, N3), dtype=jnp.float32)
    tgt3 = (jax.random.uniform(k8, (M3, N3)) > 0.5).astype(jnp.float32)
    w3 = jax.random.uniform(k9, (M3, N3), dtype=jnp.float32) + 0.1

    loss3 = weighted_bce_loss(out3, tgt3, w3)
    jax.block_until_ready(loss3)
    ref3 = _reference(out3, tgt3, w3)
    assert jnp.allclose(loss3, ref3, rtol=1e-5, atol=1e-5), (loss3, ref3)

    print("KERNEL_OK")
</pallas_src>

<mosaic_0001>
module attributes {stable_mosaic.version = 11 : i64} {
  func.func @_wbce_single_block_kernel(%arg0: i32, %arg1: memref<16x256xf32, #tpu.memory_space<vmem>>, %arg2: memref<16x256xf32, #tpu.memory_space<vmem>>, %arg3: memref<16x256xf32, #tpu.memory_space<vmem>>, %arg4: memref<1x1xf32, #tpu.memory_space<vmem>>) attributes {dimension_semantics = [#tpu.dimension_semantics<arbitrary>], iteration_bounds = array<i64: 1>, scalar_prefetch = 0 : i64, scratch_operands = 0 : i64, tpu.core_type = #tpu.core_type<tc>, window_params = [{pipeline_mode = #tpu.pipeline_mode<synchronous>, transform_indices = @transform_0, window_bounds = array<i64: 16, 256>}, {pipeline_mode = #tpu.pipeline_mode<synchronous>, transform_indices = @transform_1, window_bounds = array<i64: 16, 256>}, {pipeline_mode = #tpu.pipeline_mode<synchronous>, transform_indices = @transform_2, window_bounds = array<i64: 16, 256>}, {pipeline_mode = #tpu.pipeline_mode<synchronous>, transform_indices = @transform_3, window_bounds = array<i64: 1, 1>}]} {
    %c0 = arith.constant 0 : index
    %c0_0 = arith.constant 0 : index
    %0 = vector.load %arg1[%c0, %c0_0] : memref<16x256xf32, #tpu.memory_space<vmem>>, vector<16x256xf32>
    %c0_1 = arith.constant 0 : index
    %c0_2 = arith.constant 0 : index
    %1 = vector.load %arg2[%c0_1, %c0_2] : memref<16x256xf32, #tpu.memory_space<vmem>>, vector<16x256xf32>
    %c0_3 = arith.constant 0 : index
    %c0_4 = arith.constant 0 : index
    %2 = vector.load %arg3[%c0_3, %c0_4] : memref<16x256xf32, #tpu.memory_space<vmem>>, vector<16x256xf32>
    %cst = arith.constant 0.000000e+00 : f32
    %3 = vector.broadcast %cst : f32 to vector<16x256xf32>
    %4 = arith.maximumf %0, %3 : vector<16x256xf32>
    %5 = arith.mulf %0, %1 : vector<16x256xf32>
    %6 = arith.subf %4, %5 : vector<16x256xf32>
    %7 = math.absf %0 : vector<16x256xf32>
    %cst_5 = arith.constant 0.000000e+00 : f32
    %8 = vector.broadcast %cst_5 : f32 to vector<16x256xf32>
    %9 = arith.subf %8, %7 : vector<16x256xf32>
    %10 = math.exp %9 : vector<16x256xf32>
    %11 = math.log1p %10 : vector<16x256xf32>
    %12 = arith.addf %6, %11 : vector<16x256xf32>
    %13 = arith.mulf %12, %2 : vector<16x256xf32>
    %14 = vector.shape_cast %13 : vector<16x256xf32> to vector<1x16x256xf32>
    %cst_6 = arith.constant dense<0.000000e+00> : vector<1xf32>
    %15 = vector.multi_reduction <add>, %14, %cst_6 [1, 2] : vector<1x16x256xf32> to vector<1xf32>
    %16 = vector.shape_cast %15 : vector<1xf32> to vector<1x1x1xf32>
    %17 = vector.extract %16[0, 0, 0] : f32 from vector<1x1x1xf32>
    %18 = vector.shape_cast %2 : vector<16x256xf32> to vector<1x16x256xf32>
    %cst_7 = arith.constant dense<0.000000e+00> : vector<1xf32>
    %19 = vector.multi_reduction <add>, %18, %cst_7 [1, 2] : vector<1x16x256xf32> to vector<1xf32>
    %20 = vector.shape_cast %19 : vector<1xf32> to vector<1x1x1xf32>
    %21 = vector.extract %20[0, 0, 0] : f32 from vector<1x1x1xf32>
    %22 = arith.divf %17, %21 : f32
    %23 = vector.broadcast %22 : f32 to vector<1x1xf32>
    %c0_8 = arith.constant 0 : index
    %c0_9 = arith.constant 0 : index
    %24 = vector.load %arg4[%c0_8, %c0_9] : memref<1x1xf32, #tpu.memory_space<vmem>>, vector<1x1xf32>
    tpu.vector_store %arg4[%c0_8, %c0_9], %23 {strides = array<i32>} : memref<1x1xf32, #tpu.memory_space<vmem>>, vector<1x1xf32>,
    return
  }
  func.func @transform_0(%arg0: i32) -> (i32, i32) {
    %c0_i32 = arith.constant 0 : i32
    %c0_i32_0 = arith.constant 0 : i32
    %c0_i32_1 = arith.constant 0 : i32
    return %c0_i32, %c0_i32_0 : i32, i32
  }
  func.func @transform_1(%arg0: i32) -> (i32, i32) {
    %c0_i32 = arith.constant 0 : i32
    %c0_i32_0 = arith.constant 0 : i32
    %c0_i32_1 = arith.constant 0 : i32
    return %c0_i32, %c0_i32_0 : i32, i32
  }
  func.func @transform_2(%arg0: i32) -> (i32, i32) {
    %c0_i32 = arith.constant 0 : i32
    %c0_i32_0 = arith.constant 0 : i32
    %c0_i32_1 = arith.constant 0 : i32
    return %c0_i32, %c0_i32_0 : i32, i32
  }
  func.func @transform_3(%arg0: i32) -> (i32, i32) {
    %c0_i32 = arith.constant 0 : i32
    %c0_i32_0 = arith.constant 0 : i32
    %c0_i32_1 = arith.constant 0 : i32
    return %c0_i32, %c0_i32_0 : i32, i32
  }
}

</mosaic_0001>

<llo_original>
// kernel: tpu_custom_call.1
$region0: #{tpu_custom_call.1}
  #allocation0 [shape = 'u32[]', space=smem, size = 0x4, offset = 0x4, fixed_abs, tag = 'smem constant byte address 0x4 - core index']
  #allocation1 [shape = 'u32[72,128]{1,0:T(1,128)}', space=vmem, size = 0x9000, scoped, tag = 'internal scratch']
  %s0 = inlined_call_operand.hbm [shape: f32[16,256], index: 0, kind: input, shape index: {}]
  %s1 = inlined_call_operand.hbm [shape: f32[16,256], index: 1, kind: input, shape index: {}]
  %s2 = inlined_call_operand.hbm [shape: f32[16,256], index: 2, kind: input, shape index: {}]
  %s3 = inlined_call_operand.hbm [shape: f32[1,1], index: 3, kind: output, shape index: {}]
  %s4 = sld [smem:[#allocation0]]
  $region34: #{tpu_custom_call.1} parent=0
    _
  %s6 = ssub.s32 1, %s4
  %s7 = scalar_select 0, %s6, %s4
  $region1: #{tpu_custom_call.1} parent=0
    #allocation2 [shape = 'u8[16384]{0}', space=vmem, size = 0x4000, scoped, tag = 'input window, operand 0, single buffered']
    #allocation3 [shape = 's32[1]{0}', space=sflag, size = 0x4, scoped, tag = 'scoped memory for tpu_custom_call.1']
    #allocation4 [shape = 's32[1]{0}', space=sflag, size = 0x4, scoped, tag = 'scoped memory for tpu_custom_call.1']
    #allocation5 [shape = 'u8[16384]{0}', space=vmem, size = 0x4000, scoped, tag = 'input window, operand 1, single buffered']
    #allocation6 [shape = 's32[1]{0}', space=sflag, size = 0x4, scoped, tag = 'scoped memory for tpu_custom_call.1']
    #allocation7 [shape = 'u8[16384]{0}', space=vmem, size = 0x4000, scoped, tag = 'input window, operand 2, single buffered']
    #allocation8 [shape = 'u8[512]{0}', space=vmem, size = 0x400, scoped, tag = 'output window, operand 0, single buffered']
    %8 = vsyncpa [#allocation3], 0
    %9 = vsyncpa [#allocation6], 0
    %10 = vsyncpa [#allocation4], 0
    // Predicated region
    $region2: #{tpu_custom_call.1} parent=1 // pred_check
      _
    $region3: #{tpu_custom_call.1} parent=1 // pred_check_branch
      %12 = sbr.rel (0) target = $region5
    $region4: #{tpu_custom_call.1} parent=1 // pred_region
      %14 = vsyncadd [#allocation3], 0
      %s15 = sshll.u32 %s0, 4
      %s16 = int_to_ptr.hbm [resolvable:$true] %s15
      %s17 = sshll.u32 [#allocation2], 4
      %s18 = int_to_ptr.vmem [resolvable:$true] %s17
      %23 = dma.hbm_to_vmem [thread:$0]  %s16, 512, %s18, [#allocation3], 256, 256, 16
    $region5: #{tpu_custom_call.1} parent=1 // pred_fallthru
      _
    // Predicated region
    $region6: #{tpu_custom_call.1} parent=1 // pred_check
      _
    $region7: #{tpu_custom_call.1} parent=1 // pred_check_branch
      %25 = sbr.rel (0) target = $region9
    $region8: #{tpu_custom_call.1} parent=1 // pred_region
      %27 = vsyncadd [#allocation6], 0
      %s28 = sshll.u32 %s1, 4
      %s29 = int_to_ptr.hbm [resolvable:$true] %s28
      %s30 = sshll.u32 [#allocation5], 4
      %s31 = int_to_ptr.vmem [resolvable:$true] %s30
      %36 = dma.hbm_to_vmem [thread:$0]  %s29, 512, %s31, [#allocation6], 256, 256, 16
    $region9: #{tpu_custom_call.1} parent=1 // pred_fallthru
      _
    // Predicated region
    $region10: #{tpu_custom_call.1} parent=1 // pred_check
      _
    $region11: #{tpu_custom_call.1} parent=1 // pred_check_branch
      %38 = sbr.rel (0) target = $region13
    $region12: #{tpu_custom_call.1} parent=1 // pred_region
      %40 = vsyncadd [#allocation6], 0
      %s41 = sshll.u32 %s2, 4
      %s42 = int_to_ptr.hbm [resolvable:$true] %s41
      %s43 = sshll.u32 [#allocation7], 4
      %s44 = int_to_ptr.vmem [resolvable:$true] %s43
      %49 = dma.hbm_to_vmem [thread:$0]  %s42, 512, %s44, [#allocation6], 256, 256, 16
    $region13: #{tpu_custom_call.1} parent=1 // pred_fallthru
      _
    // Predicated region
    $region14: #{tpu_custom_call.1} parent=1 // pred_check
      _
    $region15: #{tpu_custom_call.1} parent=1 // pred_check_branch
      %51 = sbr.rel (0) target = $region17
    $region16: #{tpu_custom_call.1} parent=1 // pred_region
      %53 = dma.done [#allocation3], 512
    $region17: #{tpu_custom_call.1} parent=1 // pred_fallthru
      _
    // Predicated region
    $region18: #{tpu_custom_call.1} parent=1 // pred_check
      _
    $region19: #{tpu_custom_call.1} parent=1 // pred_check_branch
      %55 = sbr.rel (0) target = $region21
    $region20: #{tpu_custom_call.1} parent=1 // pred_region
      %57 = dma.done [#allocation6], 512
    $region21: #{tpu_custom_call.1} parent=1 // pred_fallthru
      _
    // Predicated region
    $region22: #{tpu_custom_call.1} parent=1 // pred_check
      _
    $region23: #{tpu_custom_call.1} parent=1 // pred_check_branch
      %59 = sbr.rel (0) target = $region25
    $region24: #{tpu_custom_call.1} parent=1 // pred_region
      %61 = dma.done [#allocation6], 512
    $region25: #{tpu_custom_call.1} parent=1 // pred_fallthru
      _
    %v62 = vld [vmem:[#allocation2] sm:$0xff]
    %v63 = vld [vmem:[#allocation2 + $0x8] sm:$0xff]
    %v64 = vld [vmem:[#allocation2 + $0x10] sm:$0xff]
    %v65 = vld [vmem:[#allocation2 + $0x18] sm:$0xff]
    %v66 = vld [vmem:[#allocation5] sm:$0xff]
    %v67 = vld [vmem:[#allocation5 + $0x8] sm:$0xff]
    %v68 = vld [vmem:[#allocation5 + $0x10] sm:$0xff]
    %v69 = vld [vmem:[#allocation5 + $0x18] sm:$0xff]
    %v70 = vld [vmem:[#allocation7] sm:$0xff]
    %v71 = vld [vmem:[#allocation7 + $0x8] sm:$0xff]
    %v72 = vld [vmem:[#allocation7 + $0x10] sm:$0xff]
    %v73 = vld [vmem:[#allocation7 + $0x18] sm:$0xff]
    %v74 = vmax.f32 %v62, 0.0
    %v75 = vmax.f32 %v63, 0.0
    %v76 = vmax.f32 %v64, 0.0
    %v77 = vmax.f32 %v65, 0.0
    %v78 = vmul.f32 %v62, %v66
    %v79 = vmul.f32 %v63, %v67
    %v80 = vmul.f32 %v64, %v68
    %v81 = vmul.f32 %v65, %v69
    %v82 = vsub.f32 %v74, %v78
    %v83 = vsub.f32 %v75, %v79
    %v84 = vsub.f32 %v76, %v80
    %v85 = vsub.f32 %v77, %v81
    %v86 = vand.u32 2147483647, %v62
    %v87 = vand.u32 2147483647, %v63
    %v88 = vand.u32 2147483647, %v64
    %v89 = vand.u32 2147483647, %v65
    %v90 = vsub.f32 0.0, %v86
    %v91 = vsub.f32 0.0, %v87
    %v92 = vsub.f32 0.0, %v88
    %v93 = vsub.f32 0.0, %v89
    %v94 = vmul.f32 %v90, 1.442695
    %v95 = vpow.pop %v94
    %v96 = vmul.f32 %v91, 1.442695
    %v97 = vpow.pop %v96
    %v98 = vmul.f32 %v92, 1.442695
    %v99 = vpow.pop %v98
    %v100 = vmul.f32 %v93, 1.442695
    %v101 = vpow.pop %v100
    %v102 = vadd.f32 %v95, 1.0
    %v103 = vlog2.pop %v102
    %v104 = vmul.f32 %v103, 0.6931472
    %v105 = vmul.f32 -0.5, %v95
    %v106 = vadd.f32 %v105, 1.0
    %v107 = vmul.f32 %v106, %v95
    %v108 = vand.u32 2147483647, %v95
    %vm109 = vcmp.lt.f32.partialorder %v108, 0.0004427343
    %v110 = vsel %vm109, %v107, %v104
    %v111 = vadd.f32 %v97, 1.0
    %v112 = vlog2.pop %v111
    %v113 = vmul.f32 %v112, 0.6931472
    %v114 = vmul.f32 -0.5, %v97
    %v115 = vadd.f32 %v114, 1.0
    %v116 = vmul.f32 %v115, %v97
    %v117 = vand.u32 2147483647, %v97
    %vm118 = vcmp.lt.f32.partialorder %v117, 0.0004427343
    %v119 = vsel %vm118, %v116, %v113
    %v120 = vadd.f32 %v99, 1.0
    %v121 = vlog2.pop %v120
    %v122 = vmul.f32 %v121, 0.6931472
    %v123 = vmul.f32 -0.5, %v99
    %v124 = vadd.f32 %v123, 1.0
    %v125 = vmul.f32 %v124, %v99
    %v126 = vand.u32 2147483647, %v99
    %vm127 = vcmp.lt.f32.partialorder %v126, 0.0004427343
    %v128 = vsel %vm127, %v125, %v122
    %v129 = vadd.f32 %v101, 1.0
    %v130 = vlog2.pop %v129
    %v131 = vmul.f32 %v130, 0.6931472
    %v132 = vmul.f32 -0.5, %v101
    %v133 = vadd.f32 %v132, 1.0
    %v134 = vmul.f32 %v133, %v101
    %v135 = vand.u32 2147483647, %v101
    %vm136 = vcmp.lt.f32.partialorder %v135, 0.0004427343
    %v137 = vsel %vm136, %v134, %v131
    %v138 = vadd.f32 %v82, %v110
    %v139 = vadd.f32 %v83, %v119
    %v140 = vadd.f32 %v84, %v128
    %v141 = vadd.f32 %v85, %v137
    %v142 = vmul.f32 %v138, %v70
    %v143 = vmul.f32 %v139, %v71
    %v144 = vmul.f32 %v140, %v72
    %v145 = vmul.f32 %v141, %v73
    %v146 = vadd.f32 %v142, %v143
    %v147 = vadd.f32 %v146, %v144
    %v148 = vadd.f32 %v147, %v145
    %149 = vadd.xlane.f32.xlu0 %v148
    %v150 = vpop.xlane.xlu0 %149
    %v151 = vrot.slane %v150, 4
    %v152 = vadd.f32 %v150, %v151
    %v153 = vrot.slane %v152, 2
    %v154 = vadd.f32 %v152, %v153
    %v155 = vrot.slane %v154, 1
    %v156 = vadd.f32 %v154, %v155
    %s157 = vtos %v156
    %v158 = vadd.f32 %v70, %v71
    %v159 = vadd.f32 %v158, %v72
    %v160 = vadd.f32 %v159, %v73
    %161 = vadd.xlane.f32.xlu0 %v160
    %v162 = vpop.xlane.xlu0 %161
    %v163 = vrot.slane %v162, 4
    %v164 = vadd.f32 %v162, %v163
    %v165 = vrot.slane %v164, 2
    %v166 = vadd.f32 %v164, %v165
    %v167 = vrot.slane %v166, 1
    %v168 = vadd.f32 %v166, %v167
    %s169 = vtos %v168
    %v170 = vstv %s169
    %v171 = vrcp.pop %v170
    %v172 = vmul.f32 %v170, %v171
    %v173 = vsub.f32 1.0, %v172
    %v174 = vmul.f32 %v171, %v173
    %v175 = vadd.f32 %v171, %v174
    %vm176 = vweird.f32 %v170
    %vm177 = vweird.f32 %v171
    %vm178 = vmor %vm176, %vm177
    %v179 = vsel %vm178, %v171, %v175
    %v180 = vand.u32 2147483647, %v170
    %vm181 = vcmp.eq.f32.partialorder %v180, 8.507059e+37
    %v182 = vand.u32 %v170, 2147483648
    %v183 = vor.u32 1.1754944e-38, %v182
    %v184 = vsel %vm181, %v183, %v179
    %s185 = vtos %v184
    %s186 = smul.f32 %s157, %s185
    %v187 = vstv %s186
    %vm188 = vcmask 0
    %189 = vst.msk [vmem:[#allocation8] sm:$0x1] %vm188, %v187
    // Predicated region
    $region26: #{tpu_custom_call.1} parent=1 // pred_check
      _
    $region27: #{tpu_custom_call.1} parent=1 // pred_check_branch
      %191 = sbr.rel (0) target = $region29
    $region28: #{tpu_custom_call.1} parent=1 // pred_region
      %193 = vsyncadd [#allocation4], 0
      %s195 = sshll.u32 [#allocation8], 4
      %s196 = int_to_ptr.vmem [resolvable:$true] %s195
      %s197 = sshll.u32 %s3, 4
      %s198 = int_to_ptr.hbm [resolvable:$true] %s197
      %200 = dma.vmem_to_hbm [thread:$0]  %s196, 16, %s198, [#allocation4]
    $region29: #{tpu_custom_call.1} parent=1 // pred_fallthru
      _
    // Predicated region
    $region30: #{tpu_custom_call.1} parent=1 // pred_check
      _
    $region31: #{tpu_custom_call.1} parent=1 // pred_check_branch
      %202 = sbr.rel (0) target = $region33
    $region32: #{tpu_custom_call.1} parent=1 // pred_region
      %204 = dma.done [#allocation4], 16
    $region33: #{tpu_custom_call.1} parent=1 // pred_fallthru
      _
    %205 = vsyncpa [#allocation3], 1
    %206 = vsyncpa [#allocation6], 1
    %207 = vsyncpa [#allocation4], 1

</llo_original>
